<compile_context>
chip_gen: v5e
topology: v5e:2x2
jax: 0.10.0
libtpu: 0.0.40
codegen_flags: <defaults>
</compile_context>

<pallas_src>
import jax
import jax.numpy as jnp
from jax.experimental import pallas as pl
from jax.experimental.pallas import tpu as pltpu

EPS = 1e-5
LANES = 128      # lane width: hidden/class dims are zero-padded to this
VEC_ROWS = 8     # one sublane tile for the packed parameter-vector rows


# ----------------------------------------------------------------------------
# Kernel
# ----------------------------------------------------------------------------
def _classification_net_kernel(
    x_ref,       # [B, D]              unpadded input (full-array block)
    p_ref,       # [D_pad + 256 + 8, 128]  packed parameter slab:
                 #   rows [0 : D]                 -> w1  (in x out_pad)
                 #   rows [D_pad : D_pad+128]     -> w2
                 #   rows [D_pad+128 : D_pad+256] -> w3
                 #   rows [D_pad+256 : +8]        -> b1,g1,beta1,b2,g2,beta2,b3,0
    out_ref,     # [B, 128]            padded logits (real classes in cols [:C])
):
    B, D = x_ref.shape
    d8 = (D + 7) // 8 * 8            # sublane-aligned start of the w2 section

    x = x_ref[...]
    w1 = p_ref[0:D, :]
    w2 = p_ref[d8:d8 + LANES, :]
    w3 = p_ref[d8 + LANES:d8 + 2 * LANES, :]
    vec = p_ref[d8 + 2 * LANES:d8 + 2 * LANES + VEC_ROWS, :]

    b1, g1, beta1 = vec[0:1, :], vec[1:2, :], vec[2:3, :]
    b2, g2, beta2 = vec[3:4, :], vec[4:5, :], vec[5:6, :]
    b3 = vec[6:7, :]

    def bn_relu(h, gamma, beta):
        # Two-pass, cancellation-safe variance: E[(h - mean)^2].
        m = jnp.mean(h, axis=0, keepdims=True)
        c = h - m
        var = jnp.mean(c * c, axis=0, keepdims=True)
        hn = c * jax.lax.rsqrt(var + EPS) * gamma + beta
        return jnp.maximum(hn, 0.0)

    # ---- fc1 -> BN1 -> ReLU ----
    h = jnp.dot(x, w1, preferred_element_type=jnp.float32) + b1
    h = bn_relu(h, g1, beta1)
    # (dropout_1 skipped: p1 == 0)

    # ---- fc2 -> BN2 -> ReLU ----
    h = jnp.dot(h, w2, preferred_element_type=jnp.float32) + b2
    h = bn_relu(h, g2, beta2)
    # (dropout_2 skipped: p2 == 0)

    # ---- fc3 ----
    y = jnp.dot(h, w3, preferred_element_type=jnp.float32) + b3
    out_ref[...] = y.astype(out_ref.dtype)


# ----------------------------------------------------------------------------
# Wrapper (jitted: pallas_call + class-dim slice dispatch as one executable)
# ----------------------------------------------------------------------------
def _forward_impl(x, slab, n_class):
    B, _ = x.shape

    out_padded = pl.pallas_call(
        _classification_net_kernel,
        out_shape=jax.ShapeDtypeStruct((B, LANES), jnp.float32),
        grid=(),
        in_specs=[
            pl.BlockSpec(x.shape, lambda: (0, 0)),      # full-array [B, D] block
            pl.BlockSpec(slab.shape, lambda: (0, 0)),   # full-array param slab
        ],
        out_specs=pl.BlockSpec((B, LANES), lambda: (0, 0)),
        compiler_params=pltpu.CompilerParams(
            vmem_limit_bytes=32 * 1024 * 1024,           # safe on v5e/v6e/v7x
        ),
    )(x, slab)

    # Slice away the lane padding (still inside the jit).
    return out_padded[:, :n_class]


_forward_jit = jax.jit(_forward_impl, static_argnums=(2,))


def classification_net_forward(x, packed):
    """x: [B, input_size] float32.  packed: output of pack_params()."""
    return _forward_jit(x.astype(jnp.float32), packed["slab"], packed["n_class"])


# ----------------------------------------------------------------------------
# Parameter construction / packing
# ----------------------------------------------------------------------------
def init_params(key, input_size, fc1_out, fc2_out, class_number):
    """Deterministic synthetic parameters (PyTorch-like init, pre-transposed)."""
    ks = jax.random.split(key, 6)

    def linear(kw, kb, fan_in, fan_out):
        bound = 1.0 / jnp.sqrt(fan_in)
        w = jax.random.uniform(kw, (fan_in, fan_out), jnp.float32, -bound, bound)
        b = jax.random.uniform(kb, (1, fan_out), jnp.float32, -bound, bound)
        return w, b

    w1, b1 = linear(ks[0], ks[1], input_size, fc1_out)
    w2, b2 = linear(ks[2], ks[3], fc1_out, fc2_out)
    w3, b3 = linear(ks[4], ks[5], fc2_out, class_number)
    return {
        "w1": w1, "b1": b1,
        "g1": jnp.ones((1, fc1_out), jnp.float32),
        "beta1": jnp.zeros((1, fc1_out), jnp.float32),
        "w2": w2, "b2": b2,
        "g2": jnp.ones((1, fc2_out), jnp.float32),
        "beta2": jnp.zeros((1, fc2_out), jnp.float32),
        "w3": w3, "b3": b3,
    }


def pack_params(p):
    """One-time packing.

    Zero-pads every *output* feature dim to 128 lanes, keeps fc1's real
    contraction dim, and concatenates w1 / w2 / w3 / the seven [1,N] vectors
    into a single [D_pad + 2*128 + 8, 128] f32 slab (one input DMA).

    Invariant (required for correctness of the lane padding): every padded
    column of W, b, gamma, beta is exactly zero — jnp.pad guarantees this, so
    padded hidden lanes stay 0 through BN/ReLU and contribute nothing to the
    following contractions.
    """
    D = p["w1"].shape[0]
    d8 = (D + 7) // 8 * 8
    n_class = p["w3"].shape[1]

    def pad_cols(a):
        return jnp.pad(a, ((0, 0), (0, LANES - a.shape[1])))

    w1 = jnp.pad(p["w1"], ((0, d8 - D), (0, LANES - p["w1"].shape[1])))  # [d8, 128]
    w2 = jnp.pad(p["w2"], ((0, LANES - p["w2"].shape[0]),
                           (0, LANES - p["w2"].shape[1])))               # [128, 128]
    w3 = jnp.pad(p["w3"], ((0, LANES - p["w3"].shape[0]),
                           (0, LANES - p["w3"].shape[1])))               # [128, 128]

    vec = jnp.concatenate(
        [
            pad_cols(p["b1"]), pad_cols(p["g1"]), pad_cols(p["beta1"]),
            pad_cols(p["b2"]), pad_cols(p["g2"]), pad_cols(p["beta2"]),
            pad_cols(p["b3"]),
            jnp.zeros((1, LANES), jnp.float32),   # pad to 8 sublanes
        ],
        axis=0,
    )  # [8, 128]

    slab = jnp.concatenate([w1, w2, w3, vec], axis=0).astype(jnp.float32)
    # TODO(synk): optional bf16 weight slab (halves DMA bytes) once the
    # tolerance requirement is relaxed beyond 1e-4.
    return {"slab": slab, "n_class": n_class, "input_size": D}


# ----------------------------------------------------------------------------
# Pure-JAX reference (unpadded) for a sanity check
# ----------------------------------------------------------------------------
def reference_forward(x, p):
    h = x @ p["w1"] + p["b1"]
    m = h.mean(0, keepdims=True); v = ((h - m) ** 2).mean(0, keepdims=True)
    h = jnp.maximum((h - m) / jnp.sqrt(v + EPS) * p["g1"] + p["beta1"], 0.0)
    h = h @ p["w2"] + p["b2"]
    m = h.mean(0, keepdims=True); v = ((h - m) ** 2).mean(0, keepdims=True)
    h = jnp.maximum((h - m) / jnp.sqrt(v + EPS) * p["g2"] + p["beta2"], 0.0)
    return h @ p["w3"] + p["b3"]


if __name__ == "__main__":
    # args: fc1_output_size=64, fc2_output_size=32, class_number=10, p1=p2=0.0
    B, INPUT_SIZE, FC1, FC2, NCLASS = 8, 32, 64, 32, 10

    key = jax.random.PRNGKey(0)
    kx, kp = jax.random.split(key)
    x = jax.random.normal(kx, (B, INPUT_SIZE), jnp.float32)
    params = init_params(kp, INPUT_SIZE, FC1, FC2, NCLASS)
    packed = pack_params(params)

    y = classification_net_forward(x, packed)
    y = jax.block_until_ready(y)

    y_ref = reference_forward(x, params)
    assert y.shape == (B, NCLASS)
    assert jnp.allclose(y, y_ref, atol=1e-4, rtol=1e-4)

    print("KERNEL_OK")
</pallas_src>

<mosaic_0001>
module attributes {stable_mosaic.version = 11 : i64} {
  func.func @_classification_net_kernel(%arg0: memref<8x32xf32, #tpu.memory_space<vmem>>, %arg1: memref<296x128xf32, #tpu.memory_space<vmem>>, %arg2: memref<8x128xf32, #tpu.memory_space<vmem>>) attributes {dimension_semantics = [], scalar_prefetch = 0 : i64, scratch_operands = 0 : i64, tpu.core_type = #tpu.core_type<tc>} {
    %c0 = arith.constant 0 : index
    %c0_0 = arith.constant 0 : index
    %0 = vector.load %arg0[%c0, %c0_0] : memref<8x32xf32, #tpu.memory_space<vmem>>, vector<8x32xf32>
    %c0_1 = arith.constant 0 : index
    %c0_2 = arith.constant 0 : index
    %1 = vector.load %arg1[%c0_1, %c0_2] : memref<296x128xf32, #tpu.memory_space<vmem>>, vector<32x128xf32>
    %c32 = arith.constant 32 : index
    %c0_3 = arith.constant 0 : index
    %2 = vector.load %arg1[%c32, %c0_3] : memref<296x128xf32, #tpu.memory_space<vmem>>, vector<128x128xf32>
    %c160 = arith.constant 160 : index
    %c0_4 = arith.constant 0 : index
    %3 = vector.load %arg1[%c160, %c0_4] : memref<296x128xf32, #tpu.memory_space<vmem>>, vector<128x128xf32>
    %c288 = arith.constant 288 : index
    %c0_5 = arith.constant 0 : index
    %4 = vector.load %arg1[%c288, %c0_5] : memref<296x128xf32, #tpu.memory_space<vmem>>, vector<8x128xf32>
    %5 = vector.extract_strided_slice %4 {offsets = [0, 0], sizes = [1, 128], strides = [1, 1]} : vector<8x128xf32> to vector<1x128xf32>
    %6 = vector.extract_strided_slice %4 {offsets = [1, 0], sizes = [1, 128], strides = [1, 1]} : vector<8x128xf32> to vector<1x128xf32>
    %7 = vector.extract_strided_slice %4 {offsets = [2, 0], sizes = [1, 128], strides = [1, 1]} : vector<8x128xf32> to vector<1x128xf32>
    %8 = vector.extract_strided_slice %4 {offsets = [3, 0], sizes = [1, 128], strides = [1, 1]} : vector<8x128xf32> to vector<1x128xf32>
    %9 = vector.extract_strided_slice %4 {offsets = [4, 0], sizes = [1, 128], strides = [1, 1]} : vector<8x128xf32> to vector<1x128xf32>
    %10 = vector.extract_strided_slice %4 {offsets = [5, 0], sizes = [1, 128], strides = [1, 1]} : vector<8x128xf32> to vector<1x128xf32>
    %11 = vector.extract_strided_slice %4 {offsets = [6, 0], sizes = [1, 128], strides = [1, 1]} : vector<8x128xf32> to vector<1x128xf32>
    %cst = arith.constant dense<0.000000e+00> : vector<8x128xf32>
    %12 = tpu.matmul %0, %1, %cst {dimension_numbers = #tpu.dot_dimension_numbers<[1], [0], [0], [1], [0, 0, 1, 1], [], []>} : vector<8x32xf32>, vector<32x128xf32>, vector<8x128xf32> -> vector<8x128xf32>
    %13 = vector.broadcast %5 : vector<1x128xf32> to vector<8x128xf32>
    %14 = arith.addf %12, %13 : vector<8x128xf32>
    %cst_6 = arith.constant dense<0.000000e+00> : vector<128xf32>
    %15 = vector.multi_reduction <add>, %14, %cst_6 [0] : vector<8x128xf32> to vector<128xf32>
    %16 = vector.shape_cast %15 : vector<128xf32> to vector<1x128xf32>
    %cst_7 = arith.constant 8.000000e+00 : f32
    %17 = vector.broadcast %cst_7 : f32 to vector<1x128xf32>
    %18 = arith.divf %16, %17 : vector<1x128xf32>
    %19 = vector.broadcast %18 : vector<1x128xf32> to vector<8x128xf32>
    %20 = arith.subf %14, %19 : vector<8x128xf32>
    %21 = arith.mulf %20, %20 : vector<8x128xf32>
    %cst_8 = arith.constant dense<0.000000e+00> : vector<128xf32>
    %22 = vector.multi_reduction <add>, %21, %cst_8 [0] : vector<8x128xf32> to vector<128xf32>
    %23 = vector.shape_cast %22 : vector<128xf32> to vector<1x128xf32>
    %cst_9 = arith.constant 8.000000e+00 : f32
    %24 = vector.broadcast %cst_9 : f32 to vector<1x128xf32>
    %25 = arith.divf %23, %24 : vector<1x128xf32>
    %cst_10 = arith.constant 9.99999974E-6 : f32
    %26 = vector.broadcast %cst_10 : f32 to vector<1x128xf32>
    %27 = arith.addf %25, %26 : vector<1x128xf32>
    %28 = math.rsqrt %27 : vector<1x128xf32>
    %29 = vector.broadcast %28 : vector<1x128xf32> to vector<8x128xf32>
    %30 = arith.mulf %20, %29 : vector<8x128xf32>
    %31 = vector.broadcast %6 : vector<1x128xf32> to vector<8x128xf32>
    %32 = arith.mulf %30, %31 : vector<8x128xf32>
    %33 = vector.broadcast %7 : vector<1x128xf32> to vector<8x128xf32>
    %34 = arith.addf %32, %33 : vector<8x128xf32>
    %cst_11 = arith.constant 0.000000e+00 : f32
    %35 = vector.broadcast %cst_11 : f32 to vector<8x128xf32>
    %36 = arith.maximumf %34, %35 : vector<8x128xf32>
    %cst_12 = arith.constant dense<0.000000e+00> : vector<8x128xf32>
    %37 = tpu.matmul %36, %2, %cst_12 {dimension_numbers = #tpu.dot_dimension_numbers<[1], [0], [0], [1], [0, 0, 1, 1], [], []>} : vector<8x128xf32>, vector<128x128xf32>, vector<8x128xf32> -> vector<8x128xf32>
    %38 = vector.broadcast %8 : vector<1x128xf32> to vector<8x128xf32>
    %39 = arith.addf %37, %38 : vector<8x128xf32>
    %cst_13 = arith.constant dense<0.000000e+00> : vector<128xf32>
    %40 = vector.multi_reduction <add>, %39, %cst_13 [0] : vector<8x128xf32> to vector<128xf32>
    %41 = vector.shape_cast %40 : vector<128xf32> to vector<1x128xf32>
    %cst_14 = arith.constant 8.000000e+00 : f32
    %42 = vector.broadcast %cst_14 : f32 to vector<1x128xf32>
    %43 = arith.divf %41, %42 : vector<1x128xf32>
    %44 = vector.broadcast %43 : vector<1x128xf32> to vector<8x128xf32>
    %45 = arith.subf %39, %44 : vector<8x128xf32>
    %46 = arith.mulf %45, %45 : vector<8x128xf32>
    %cst_15 = arith.constant dense<0.000000e+00> : vector<128xf32>
    %47 = vector.multi_reduction <add>, %46, %cst_15 [0] : vector<8x128xf32> to vector<128xf32>
    %48 = vector.shape_cast %47 : vector<128xf32> to vector<1x128xf32>
    %cst_16 = arith.constant 8.000000e+00 : f32
    %49 = vector.broadcast %cst_16 : f32 to vector<1x128xf32>
    %50 = arith.divf %48, %49 : vector<1x128xf32>
    %cst_17 = arith.constant 9.99999974E-6 : f32
    %51 = vector.broadcast %cst_17 : f32 to vector<1x128xf32>
    %52 = arith.addf %50, %51 : vector<1x128xf32>
    %53 = math.rsqrt %52 : vector<1x128xf32>
    %54 = vector.broadcast %53 : vector<1x128xf32> to vector<8x128xf32>
    %55 = arith.mulf %45, %54 : vector<8x128xf32>
    %56 = vector.broadcast %9 : vector<1x128xf32> to vector<8x128xf32>
    %57 = arith.mulf %55, %56 : vector<8x128xf32>
    %58 = vector.broadcast %10 : vector<1x128xf32> to vector<8x128xf32>
    %59 = arith.addf %57, %58 : vector<8x128xf32>
    %cst_18 = arith.constant 0.000000e+00 : f32
    %60 = vector.broadcast %cst_18 : f32 to vector<8x128xf32>
    %61 = arith.maximumf %59, %60 : vector<8x128xf32>
    %cst_19 = arith.constant dense<0.000000e+00> : vector<8x128xf32>
    %62 = tpu.matmul %61, %3, %cst_19 {dimension_numbers = #tpu.dot_dimension_numbers<[1], [0], [0], [1], [0, 0, 1, 1], [], []>} : vector<8x128xf32>, vector<128x128xf32>, vector<8x128xf32> -> vector<8x128xf32>
    %63 = vector.broadcast %11 : vector<1x128xf32> to vector<8x128xf32>
    %64 = arith.addf %62, %63 : vector<8x128xf32>
    %c0_20 = arith.constant 0 : index
    %c0_21 = arith.constant 0 : index
    %65 = vector.load %arg2[%c0_20, %c0_21] : memref<8x128xf32, #tpu.memory_space<vmem>>, vector<8x128xf32>
    tpu.vector_store %arg2[%c0_20, %c0_21], %64 {strides = array<i32>} : memref<8x128xf32, #tpu.memory_space<vmem>>, vector<8x128xf32>,
    return
  }
}

</mosaic_0001>

<llo_original>
// kernel: _forward_impl.1
$region0: #{_forward_impl.1}
  #allocation0 [shape = 'u32[]', space=smem, size = 0x4, offset = 0x4, fixed_abs, tag = 'smem constant byte address 0x4 - core index']
  #allocation1 [shape = 'u32[72,128]{1,0:T(1,128)}', space=vmem, size = 0x9000, scoped, tag = 'internal scratch']
  %s0 = inlined_call_operand.hbm [shape: f32[8,32], index: 0, kind: input, shape index: {}]
  %s1 = inlined_call_operand.hbm [shape: f32[296,128], index: 1, kind: input, shape index: {}]
  %s2 = inlined_call_operand.hbm [shape: f32[8,128], index: 2, kind: output, shape index: {}]
  %s3 = sld [smem:[#allocation0]]
  $region26: #{_forward_impl.1} parent=0
    _
  %s5 = ssub.s32 1, %s3
  %s6 = scalar_select 0, %s5, %s3
  $region1: #{_forward_impl.1} parent=0
    #allocation2 [shape = 'u8[4096]{0}', space=vmem, size = 0x1000, scoped, tag = 'input window, operand 0, single buffered']
    #allocation3 [shape = 's32[1]{0}', space=sflag, size = 0x4, scoped, tag = 'scoped memory for _forward_impl.1']
    #allocation4 [shape = 's32[1]{0}', space=sflag, size = 0x4, scoped, tag = 'scoped memory for _forward_impl.1']
    #allocation5 [shape = 'u8[151552]{0}', space=vmem, size = 0x25000, scoped, tag = 'input window, operand 1, single buffered']
    #allocation6 [shape = 's32[1]{0}', space=sflag, size = 0x4, scoped, tag = 'scoped memory for _forward_impl.1']
    #allocation7 [shape = 'u8[4096]{0}', space=vmem, size = 0x1000, scoped, tag = 'output window, operand 0, single buffered']
    %7 = vsyncpa [#allocation3], 0
    %8 = vsyncpa [#allocation6], 0
    %9 = vsyncpa [#allocation4], 0
    // Predicated region
    $region2: #{_forward_impl.1} parent=1 // pred_check
      _
    $region3: #{_forward_impl.1} parent=1 // pred_check_branch
      %11 = sbr.rel (0) target = $region5
    $region4: #{_forward_impl.1} parent=1 // pred_region
      %13 = vsyncadd [#allocation3], 0
      %s15 = sshll.u32 %s0, 4
      %s16 = int_to_ptr.hbm [resolvable:$true] %s15
      %s17 = sshll.u32 [#allocation2], 4
      %s18 = int_to_ptr.vmem [resolvable:$true] %s17
      %20 = dma.hbm_to_vmem [thread:$0]  %s16, 128, %s18, [#allocation3]
    $region5: #{_forward_impl.1} parent=1 // pred_fallthru
      _
    // Predicated region
    $region6: #{_forward_impl.1} parent=1 // pred_check
      _
    $region7: #{_forward_impl.1} parent=1 // pred_check_branch
      %22 = sbr.rel (0) target = $region9
    $region8: #{_forward_impl.1} parent=1 // pred_region
      %24 = vsyncadd [#allocation6], 0
      %s25 = sshll.u32 %s1, 4
      %s26 = int_to_ptr.hbm [resolvable:$true] %s25
      %s27 = sshll.u32 [#allocation5], 4
      %s28 = int_to_ptr.vmem [resolvable:$true] %s27
      %33 = dma.hbm_to_vmem [thread:$0]  %s26, 4736, %s28, [#allocation6], 128, 128, 8
    $region9: #{_forward_impl.1} parent=1 // pred_fallthru
      _
    // Predicated region
    $region10: #{_forward_impl.1} parent=1 // pred_check
      _
    $region11: #{_forward_impl.1} parent=1 // pred_check_branch
      %35 = sbr.rel (0) target = $region13
    $region12: #{_forward_impl.1} parent=1 // pred_region
      %37 = dma.done [#allocation3], 128
    $region13: #{_forward_impl.1} parent=1 // pred_fallthru
      _
    // Predicated region
    $region14: #{_forward_impl.1} parent=1 // pred_check
      _
    $region15: #{_forward_impl.1} parent=1 // pred_check_branch
      %39 = sbr.rel (0) target = $region17
    $region16: #{_forward_impl.1} parent=1 // pred_region
      %41 = dma.done [#allocation6], 4736
    $region17: #{_forward_impl.1} parent=1 // pred_fallthru
      _
    %v42 = vld [vmem:[#allocation2] sm:$0xff]
    %v43 = vld [vmem:[#allocation5] sm:$0xff]
    %v44 = vld [vmem:[#allocation5 + $0x8] sm:$0xff]
    %v45 = vld [vmem:[#allocation5 + $0x10] sm:$0xff]
    %v46 = vld [vmem:[#allocation5 + $0x18] sm:$0xff]
    %v47 = vld [vmem:[#allocation5 + $0x20] sm:$0xff]
    %v48 = vld [vmem:[#allocation5 + $0x28] sm:$0xff]
    %v49 = vld [vmem:[#allocation5 + $0x30] sm:$0xff]
    %v50 = vld [vmem:[#allocation5 + $0x38] sm:$0xff]
    %v51 = vld [vmem:[#allocation5 + $0x40] sm:$0xff]
    %v52 = vld [vmem:[#allocation5 + $0x48] sm:$0xff]
    %v53 = vld [vmem:[#allocation5 + $0x50] sm:$0xff]
    %v54 = vld [vmem:[#allocation5 + $0x58] sm:$0xff]
    %v55 = vld [vmem:[#allocation5 + $0x60] sm:$0xff]
    %v56 = vld [vmem:[#allocation5 + $0x68] sm:$0xff]
    %v57 = vld [vmem:[#allocation5 + $0x70] sm:$0xff]
    %v58 = vld [vmem:[#allocation5 + $0x78] sm:$0xff]
    %v59 = vld [vmem:[#allocation5 + $0x80] sm:$0xff]
    %v60 = vld [vmem:[#allocation5 + $0x88] sm:$0xff]
    %v61 = vld [vmem:[#allocation5 + $0x90] sm:$0xff]
    %v62 = vld [vmem:[#allocation5 + $0x98] sm:$0xff]
    %v63 = vld [vmem:[#allocation5 + $0xa0] sm:$0xff]
    %v64 = vld [vmem:[#allocation5 + $0xa8] sm:$0xff]
    %v65 = vld [vmem:[#allocation5 + $0xb0] sm:$0xff]
    %v66 = vld [vmem:[#allocation5 + $0xb8] sm:$0xff]
    %v67 = vld [vmem:[#allocation5 + $0xc0] sm:$0xff]
    %v68 = vld [vmem:[#allocation5 + $0xc8] sm:$0xff]
    %v69 = vld [vmem:[#allocation5 + $0xd0] sm:$0xff]
    %v70 = vld [vmem:[#allocation5 + $0xd8] sm:$0xff]
    %v71 = vld [vmem:[#allocation5 + $0xe0] sm:$0xff]
    %v72 = vld [vmem:[#allocation5 + $0xe8] sm:$0xff]
    %v73 = vld [vmem:[#allocation5 + $0xf0] sm:$0xff]
    %v74 = vld [vmem:[#allocation5 + $0xf8] sm:$0xff]
    %v75 = vld [vmem:[#allocation5 + $0x100] sm:$0xff]
    %v76 = vld [vmem:[#allocation5 + $0x108] sm:$0xff]
    %v77 = vld [vmem:[#allocation5 + $0x110] sm:$0xff]
    %v78 = vld [vmem:[#allocation5 + $0x118] sm:$0xff]
    %v79 = vld [vmem:[#allocation5 + $0x120] sm:$0xff]
    %v80 = vperm.slane %v79, 0
    %vm81 = vcmask 261120
    %v83 = vsel %vm81, %v42, 0
    %85 = vmatpush.msra.mxu0 0.0
    %86 = vmatpush.msra.mxu0 0.0
    %87 = vmatpush.msra.mxu0 0.0
    %88 = vmatpush.msra.mxu0 0.0
    %89 = vmatpush.msra.mxu0 0.0
    %90 = vmatpush.msra.mxu0 0.0
    %91 = vmatpush.msra.mxu0 0.0
    %92 = vmatpush.msra.mxu0 0.0
    %93 = vmatpush.msra.mxu0 0.0
    %94 = vmatpush.msra.mxu0 0.0
    %95 = vmatpush.msra.mxu0 0.0
    %96 = vmatpush.msra.mxu0 0.0
    %97 = vmatpush.msra.mxu0 %v46
    %98 = vmatpush.msra.mxu0 %v45
    %99 = vmatpush.msra.mxu0 %v44
    %100 = vmatpush.msra.mxu0 %v43
    %101 = vmatmul.f32.gmra.mxu0 %v83
    %v102 = vpop.f32.mrf.mxu0
    %v103 = vadd.f32 %v80, %v102
    %104 = vdwg.mxu0
    %v105 = vrot.slane %v103, 4
    %v106 = vadd.f32 %v103, %v105
    %v107 = vrot.slane %v106, 2
    %v108 = vadd.f32 %v106, %v107
    %v109 = vrot.slane %v108, 1
    %v110 = vadd.f32 %v108, %v109
    %v111 = vrcp.pop 8.0
    %v112 = vmul.f32 8.0, %v111
    %v113 = vsub.f32 1.0, %v112
    %v114 = vmul.f32 %v111, %v113
    %v115 = vadd.f32 %v111, %v114
    %vm116 = vweird.f32 %v111
    %v117 = vsel %vm116, %v111, %v115
    %v118 = vmul.f32 %v110, %v117
    %v119 = vsub.f32 %v103, %v118
    %v120 = vmul.f32 %v119, %v119
    %v121 = vrot.slane %v120, 4
    %v122 = vadd.f32 %v120, %v121
    %v123 = vrot.slane %v122, 2
    %v124 = vadd.f32 %v122, %v123
    %v125 = vrot.slane %v124, 1
    %v126 = vadd.f32 %v124, %v125
    %v127 = vmul.f32 %v126, %v117
    %v128 = vadd.f32 %v127, 1e-05
    %v129 = vrsqrt.pop %v128
    %v130 = vmul.f32 %v129, %v128
    %v131 = vmul.f32 %v130, %v129
    %v132 = vmul.f32 0.5, %v131
    %v133 = vsub.f32 1.5, %v132
    %v134 = vmul.f32 %v129, %v133
    %vm135 = vweird.f32 %v128
    %vm136 = vweird.f32 %v129
    %vm137 = vmor %vm135, %vm136
    %v138 = vsel %vm137, %v129, %v134
    %v139 = vmul.f32 %v119, %v138
    %v140 = vperm.slane %v79, 1
    %v141 = vmul.f32 %v139, %v140
    %v142 = vperm.slane %v79, 2
    %v143 = vadd.f32 %v141, %v142
    %v144 = vmax.f32 %v143, 0.0
    %v145 = vperm.slane %v79, 3
    %146 = vmatpush.msra.mxu0 %v62
    %147 = vmatpush.msra.mxu0 %v61
    %148 = vmatpush.msra.mxu0 %v60
    %149 = vmatpush.msra.mxu0 %v59
    %150 = vmatpush.msra.mxu0 %v58
    %151 = vmatpush.msra.mxu0 %v57
    %152 = vmatpush.msra.mxu0 %v56
    %153 = vmatpush.msra.mxu0 %v55
    %154 = vmatpush.msra.mxu0 %v54
    %155 = vmatpush.msra.mxu0 %v53
    %156 = vmatpush.msra.mxu0 %v52
    %157 = vmatpush.msra.mxu0 %v51
    %158 = vmatpush.msra.mxu0 %v50
    %159 = vmatpush.msra.mxu0 %v49
    %160 = vmatpush.msra.mxu0 %v48
    %161 = vmatpush.msra.mxu0 %v47
    %162 = vmatmul.f32.gmra.mxu0 %v144
    %v163 = vpop.f32.mrf.mxu0
    %v164 = vadd.f32 %v145, %v163
    %165 = vdwg.mxu0
    %v166 = vrot.slane %v164, 4
    %v167 = vadd.f32 %v164, %v166
    %v168 = vrot.slane %v167, 2
    %v169 = vadd.f32 %v167, %v168
    %v170 = vrot.slane %v169, 1
    %v171 = vadd.f32 %v169, %v170
    %v172 = vmul.f32 %v171, %v117
    %v173 = vsub.f32 %v164, %v172
    %v174 = vmul.f32 %v173, %v173
    %v175 = vrot.slane %v174, 4
    %v176 = vadd.f32 %v174, %v175
    %v177 = vrot.slane %v176, 2
    %v178 = vadd.f32 %v176, %v177
    %v179 = vrot.slane %v178, 1
    %v180 = vadd.f32 %v178, %v179
    %v181 = vmul.f32 %v180, %v117
    %v182 = vadd.f32 %v181, 1e-05
    %v183 = vrsqrt.pop %v182
    %v184 = vmul.f32 %v183, %v182
    %v185 = vmul.f32 %v184, %v183
    %v186 = vmul.f32 0.5, %v185
    %v187 = vsub.f32 1.5, %v186
    %v188 = vmul.f32 %v183, %v187
    %vm189 = vweird.f32 %v182
    %vm190 = vweird.f32 %v183
    %vm191 = vmor %vm189, %vm190
    %v192 = vsel %vm191, %v183, %v188
    %v193 = vmul.f32 %v173, %v192
    %v194 = vperm.slane %v79, 4
    %v195 = vmul.f32 %v193, %v194
    %v196 = vperm.slane %v79, 5
    %v197 = vadd.f32 %v195, %v196
    %v198 = vmax.f32 %v197, 0.0
    %v199 = vperm.slane %v79, 6
    %200 = vmatpush.msra.mxu0 %v78
    %201 = vmatpush.msra.mxu0 %v77
    %202 = vmatpush.msra.mxu0 %v76
    %203 = vmatpush.msra.mxu0 %v75
    %204 = vmatpush.msra.mxu0 %v74
    %205 = vmatpush.msra.mxu0 %v73
    %206 = vmatpush.msra.mxu0 %v72
    %207 = vmatpush.msra.mxu0 %v71
    %208 = vmatpush.msra.mxu0 %v70
    %209 = vmatpush.msra.mxu0 %v69
    %210 = vmatpush.msra.mxu0 %v68
    %211 = vmatpush.msra.mxu0 %v67
    %212 = vmatpush.msra.mxu0 %v66
    %213 = vmatpush.msra.mxu0 %v65
    %214 = vmatpush.msra.mxu0 %v64
    %215 = vmatpush.msra.mxu0 %v63
    %216 = vmatmul.f32.gmra.mxu0 %v198
    %v217 = vpop.f32.mrf.mxu0
    %v218 = vadd.f32 %v199, %v217
    %219 = vdwg.mxu0
    %220 = vst [vmem:[#allocation7] sm:$0xff] %v218
    // Predicated region
    $region18: #{_forward_impl.1} parent=1 // pred_check
      _
    $region19: #{_forward_impl.1} parent=1 // pred_check_branch
      %222 = sbr.rel (0) target = $region21
    $region20: #{_forward_impl.1} parent=1 // pred_region
      %224 = vsyncadd [#allocation4], 0
      %s226 = sshll.u32 [#allocation7], 4
      %s227 = int_to_ptr.vmem [resolvable:$true] %s226
      %s228 = sshll.u32 %s2, 4
      %s229 = int_to_ptr.hbm [resolvable:$true] %s228
      %231 = dma.vmem_to_hbm [thread:$0]  %s227, 128, %s229, [#allocation4]
    $region21: #{_forward_impl.1} parent=1 // pred_fallthru
      _
    // Predicated region
    $region22: #{_forward_impl.1} parent=1 // pred_check
      _
    $region23: #{_forward_impl.1} parent=1 // pred_check_branch
      %233 = sbr.rel (0) target = $region25
    $region24: #{_forward_impl.1} parent=1 // pred_region
      %235 = dma.done [#allocation4], 128
    $region25: #{_forward_impl.1} parent=1 // pred_fallthru
      _
    %236 = vsyncpa [#allocation3], 1
    %237 = vsyncpa [#allocation6], 1
    %238 = vsyncpa [#allocation4], 1

</llo_original>
